<compile_context>
chip_gen: v5e
topology: v5e:2x2
jax: 0.10.0
libtpu: 0.0.40
codegen_flags: <defaults>
</compile_context>

<pallas_src>
import functools

import jax
import jax.numpy as jnp
from jax.experimental import pallas as pl
from jax.experimental.pallas import tpu as pltpu

LANE = 128     # vreg lane width / MXU grain
SUBLANE = 8    # f32 sublane grain


def _round_up(n, m):
    return ((n + m - 1) // m) * m


def ffnn_kernel(x_ref, w1_ref, b1_ref, w2_ref, b2_ref, o_ref, *, out_dim):
    # Hidden layer: x @ W1 + b1, ReLU. MXU inputs in bf16 (weights pre-cast), f32 accum.
    x = x_ref[...].astype(w1_ref.dtype)
    h = jnp.dot(x, w1_ref[...], preferred_element_type=jnp.float32) + b1_ref[...]
    h = jnp.maximum(h, 0.0)

    # Output layer: h @ W2 + b2 -> lane-padded logits (tb, n_pad), f32.
    y = jnp.dot(h.astype(w2_ref.dtype), w2_ref[...],
                preferred_element_type=jnp.float32) + b2_ref[...]

    # Mask padded logit lanes to -inf (exp(-inf)=0) so the log-softmax over the real
    # lanes is exact. Mask comes from a single (1, n_pad) iota row, broadcast by where.
    lane_ids = jax.lax.broadcasted_iota(jnp.int32, (1, y.shape[-1]), 1)
    y = jnp.where(lane_ids < out_dim, y, -jnp.inf)

    # Stable log-softmax over the last axis (PyTorch LogSoftmax -> dim=1 on 2-D input).
    m = jnp.max(y, axis=-1, keepdims=True)
    s = y - m
    lse = jnp.log(jnp.sum(jnp.exp(s), axis=-1, keepdims=True))
    logp = s - lse

    # Narrow writeback: only the real out_dim lanes reach HBM.
    o_ref[...] = logp[:, :out_dim]


def prepare_params(w1, b1, w2, b2, *, matmul_dtype=jnp.bfloat16):
    """One-time param prep (hoisted out of the per-call forward).

    w1: (in_dim, H), b1: (1, H), w2: (H, out_dim), b2: (1, out_dim).
    Pads H and out_dim to the 128-lane grain (zero pad is exact through matmul+bias+ReLU;
    padded logit lanes are -inf-masked in-kernel) and casts weights to bf16 for the MXU.
    """
    in_dim, hidden = w1.shape
    out_dim = w2.shape[1]
    h_pad = _round_up(hidden, LANE)
    n_pad = _round_up(out_dim, LANE)

    w1_p = jnp.pad(w1, ((0, 0), (0, h_pad - hidden))).astype(matmul_dtype)
    b1_p = jnp.pad(b1.reshape(1, -1), ((0, 0), (0, h_pad - hidden))).astype(jnp.float32)
    w2_p = jnp.pad(w2, ((0, h_pad - hidden), (0, n_pad - out_dim))).astype(matmul_dtype)
    b2_p = jnp.pad(b2.reshape(1, -1), ((0, 0), (0, n_pad - out_dim))).astype(jnp.float32)
    return w1_p, b1_p, w2_p, b2_p


def ffnn_forward(x, w1_p, b1_p, w2_p, b2_p, *, out_dim, tb=None):
    """x: (B, in_dim) f32; params from prepare_params. Returns (B, out_dim) log-probs."""
    batch, in_dim = x.shape
    h_pad = w1_p.shape[1]
    n_pad = w2_p.shape[1]

    # Batch tile: sublane-aligned for small batches (no 16x row padding at batch=8),
    # up to 512 rows for large batches (amortizes per-step overhead; >=2 grid steps
    # then shard across both v7x TensorCores via the "parallel" axis).
    if tb is None:
        tb = min(512, _round_up(max(batch, SUBLANE), SUBLANE))
    b_pad = _round_up(batch, tb)
    x_p = x if b_pad == batch else jnp.pad(x, ((0, b_pad - batch), (0, 0)))

    grid = (b_pad // tb,)
    kernel = functools.partial(ffnn_kernel, out_dim=out_dim)

    out = pl.pallas_call(
        kernel,
        out_shape=jax.ShapeDtypeStruct((b_pad, out_dim), jnp.float32),
        grid_spec=pltpu.PrefetchScalarGridSpec(
            num_scalar_prefetch=0,
            grid=grid,
            in_specs=[
                # Batch-tiled activations; x is unpadded in K (block last dim == full dim).
                pl.BlockSpec((tb, in_dim), lambda i: (i, 0)),
                # Weights & biases: constant index_map -> VMEM-resident, one HBM fetch.
                pl.BlockSpec((in_dim, h_pad), lambda i: (0, 0)),
                pl.BlockSpec((1, h_pad), lambda i: (0, 0)),
                pl.BlockSpec((h_pad, n_pad), lambda i: (0, 0)),
                pl.BlockSpec((1, n_pad), lambda i: (0, 0)),
            ],
            # Narrow output block: only out_dim real lanes are written back.
            out_specs=pl.BlockSpec((tb, out_dim), lambda i: (i, 0)),
        ),
        compiler_params=pltpu.CompilerParams(
            dimension_semantics=("parallel",),
        ),
    )(x_p, w1_p, b1_p, w2_p, b2_p)

    return out if b_pad == batch else out[:batch]


def init_params(key, input_dim, h, output_dim):
    # Deterministic init mimicking nn.Linear's uniform(-1/sqrt(fan_in), 1/sqrt(fan_in)).
    # Weights stored pre-transposed as (in_features, out_features) so the kernel computes
    # x @ W + b (== PyTorch x @ W.T + b with W of shape (out, in)).
    k1, k2, k3, k4 = jax.random.split(key, 4)
    bound1 = 1.0 / jnp.sqrt(input_dim)
    bound2 = 1.0 / jnp.sqrt(h)
    w1 = jax.random.uniform(k1, (input_dim, h), jnp.float32, -bound1, bound1)
    b1 = jax.random.uniform(k2, (1, h), jnp.float32, -bound1, bound1)
    w2 = jax.random.uniform(k3, (h, output_dim), jnp.float32, -bound2, bound2)
    b2 = jax.random.uniform(k4, (1, output_dim), jnp.float32, -bound2, bound2)
    return w1, b1, w2, b2


if __name__ == "__main__":
    input_dim = 32
    hidden = 64
    output_dim = 5
    batch = 8

    key = jax.random.PRNGKey(0)
    kx, kp = jax.random.split(key)
    x = jax.random.normal(kx, (batch, input_dim), jnp.float32)
    w1, b1, w2, b2 = init_params(kp, input_dim, hidden, output_dim)

    # Pad / cast params once (outside the jitted forward).
    w1_p, b1_p, w2_p, b2_p = prepare_params(w1, b1, w2, b2)

    fwd = jax.jit(functools.partial(ffnn_forward, out_dim=output_dim))
    out = fwd(x, w1_p, b1_p, w2_p, b2_p)
    jax.block_until_ready(out)
    assert out.shape == (batch, output_dim), out.shape

    # Reference with matching bf16 MXU inputs / f32 accumulation + f32 elementwise.
    h_ref = jnp.maximum(
        jnp.dot(x.astype(jnp.bfloat16), w1.astype(jnp.bfloat16),
                preferred_element_type=jnp.float32) + b1, 0.0)
    y_ref = jnp.dot(h_ref.astype(jnp.bfloat16), w2.astype(jnp.bfloat16),
                    preferred_element_type=jnp.float32) + b2
    ref_bf16 = jax.nn.log_softmax(y_ref, axis=-1)
    assert jnp.allclose(out, ref_bf16, atol=2e-3, rtol=2e-3), \
        float(jnp.max(jnp.abs(out - ref_bf16)))

    # Sanity vs. the pure-f32 reference (bf16 MXU inputs cost a few 1e-3 on the logits).
    ref_f32 = jax.nn.log_softmax(jnp.maximum(x @ w1 + b1, 0.0) @ w2 + b2, axis=-1)
    assert jnp.allclose(out, ref_f32, atol=5e-2, rtol=5e-2), \
        float(jnp.max(jnp.abs(out - ref_f32)))

    print("KERNEL_OK")
</pallas_src>

<mosaic_0001>
module attributes {stable_mosaic.version = 11 : i64} {
  func.func @ffnn_kernel(%arg0: i32, %arg1: memref<8x32xf32, #tpu.memory_space<vmem>>, %arg2: memref<32x128xbf16, #tpu.memory_space<vmem>>, %arg3: memref<1x128xf32, #tpu.memory_space<vmem>>, %arg4: memref<128x128xbf16, #tpu.memory_space<vmem>>, %arg5: memref<1x128xf32, #tpu.memory_space<vmem>>, %arg6: memref<8x5xf32, #tpu.memory_space<vmem>>) attributes {dimension_semantics = [#tpu.dimension_semantics<parallel>], iteration_bounds = array<i64: 1>, scalar_prefetch = 0 : i64, scratch_operands = 0 : i64, tpu.core_type = #tpu.core_type<tc>, window_params = [{transform_indices = @transform_0, window_bounds = array<i64: 8, 32>}, {pipeline_mode = #tpu.pipeline_mode<synchronous>, transform_indices = @transform_1, window_bounds = array<i64: 32, 128>}, {pipeline_mode = #tpu.pipeline_mode<synchronous>, transform_indices = @transform_2, window_bounds = array<i64: 1, 128>}, {pipeline_mode = #tpu.pipeline_mode<synchronous>, transform_indices = @transform_3, window_bounds = array<i64: 128, 128>}, {pipeline_mode = #tpu.pipeline_mode<synchronous>, transform_indices = @transform_4, window_bounds = array<i64: 1, 128>}, {transform_indices = @transform_5, window_bounds = array<i64: 8, 5>}]} {
    %c0 = arith.constant 0 : index
    %c0_0 = arith.constant 0 : index
    %0 = vector.load %arg1[%c0, %c0_0] : memref<8x32xf32, #tpu.memory_space<vmem>>, vector<8x32xf32>
    %1 = arith.truncf %0 : vector<8x32xf32> to vector<8x32xbf16>
    %c0_1 = arith.constant 0 : index
    %c0_2 = arith.constant 0 : index
    %2 = vector.load %arg2[%c0_1, %c0_2] : memref<32x128xbf16, #tpu.memory_space<vmem>>, vector<32x128xbf16>
    %cst = arith.constant dense<0.000000e+00> : vector<8x128xf32>
    %3 = tpu.matmul %1, %2, %cst {dimension_numbers = #tpu.dot_dimension_numbers<[1], [0], [0], [1], [0, 0, 1, 1], [], []>} : vector<8x32xbf16>, vector<32x128xbf16>, vector<8x128xf32> -> vector<8x128xf32>
    %c0_3 = arith.constant 0 : index
    %c0_4 = arith.constant 0 : index
    %4 = vector.load %arg3[%c0_3, %c0_4] : memref<1x128xf32, #tpu.memory_space<vmem>>, vector<1x128xf32>
    %5 = vector.broadcast %4 : vector<1x128xf32> to vector<8x128xf32>
    %6 = arith.addf %3, %5 : vector<8x128xf32>
    %cst_5 = arith.constant 0.000000e+00 : f32
    %7 = vector.broadcast %cst_5 : f32 to vector<8x128xf32>
    %8 = arith.maximumf %6, %7 : vector<8x128xf32>
    %9 = arith.truncf %8 : vector<8x128xf32> to vector<8x128xbf16>
    %c0_6 = arith.constant 0 : index
    %c0_7 = arith.constant 0 : index
    %10 = vector.load %arg4[%c0_6, %c0_7] : memref<128x128xbf16, #tpu.memory_space<vmem>>, vector<128x128xbf16>
    %cst_8 = arith.constant dense<0.000000e+00> : vector<8x128xf32>
    %11 = tpu.matmul %9, %10, %cst_8 {dimension_numbers = #tpu.dot_dimension_numbers<[1], [0], [0], [1], [0, 0, 1, 1], [], []>} : vector<8x128xbf16>, vector<128x128xbf16>, vector<8x128xf32> -> vector<8x128xf32>
    %c0_9 = arith.constant 0 : index
    %c0_10 = arith.constant 0 : index
    %12 = vector.load %arg5[%c0_9, %c0_10] : memref<1x128xf32, #tpu.memory_space<vmem>>, vector<1x128xf32>
    %13 = vector.broadcast %12 : vector<1x128xf32> to vector<8x128xf32>
    %14 = arith.addf %11, %13 : vector<8x128xf32>
    %15 = tpu.iota {dimensions = array<i32: 1>} : vector<1x128xi32>
    %c5_i32 = arith.constant 5 : i32
    %16 = vector.broadcast %c5_i32 : i32 to vector<1x128xi32>
    %17 = arith.cmpi slt, %15, %16 : vector<1x128xi32>
    %cst_11 = arith.constant 0xFF800000 : f32
    %18 = vector.shape_cast %17 : vector<1x128xi1> to vector<1x128xi1>
    %19 = vector.broadcast %18 : vector<1x128xi1> to vector<8x128xi1>
    %20 = vector.broadcast %cst_11 : f32 to vector<8x128xf32>
    %21 = arith.select %19, %14, %20 : vector<8x128xi1>, vector<8x128xf32>
    %cst_12 = arith.constant dense<0xFF800000> : vector<8xf32>
    %22 = vector.multi_reduction <maximumf>, %21, %cst_12 [1] : vector<8x128xf32> to vector<8xf32>
    %23 = vector.shape_cast %22 : vector<8xf32> to vector<8x1xf32>
    %24 = vector.broadcast %23 : vector<8x1xf32> to vector<8x128xf32>
    %25 = arith.subf %21, %24 : vector<8x128xf32>
    %26 = math.exp %25 : vector<8x128xf32>
    %cst_13 = arith.constant dense<0.000000e+00> : vector<8xf32>
    %27 = vector.multi_reduction <add>, %26, %cst_13 [1] : vector<8x128xf32> to vector<8xf32>
    %28 = vector.shape_cast %27 : vector<8xf32> to vector<8x1xf32>
    %29 = math.log %28 : vector<8x1xf32>
    %30 = vector.broadcast %29 : vector<8x1xf32> to vector<8x128xf32>
    %31 = arith.subf %25, %30 : vector<8x128xf32>
    %32 = vector.extract_strided_slice %31 {offsets = [0, 0], sizes = [8, 5], strides = [1, 1]} : vector<8x128xf32> to vector<8x5xf32>
    %c0_14 = arith.constant 0 : index
    %c0_15 = arith.constant 0 : index
    %33 = vector.load %arg6[%c0_14, %c0_15] : memref<8x5xf32, #tpu.memory_space<vmem>>, vector<8x5xf32>
    tpu.vector_store %arg6[%c0_14, %c0_15], %32 {strides = array<i32>} : memref<8x5xf32, #tpu.memory_space<vmem>>, vector<8x5xf32>,
    return
  }
  func.func @transform_0(%arg0: i32) -> (i32, i32) {
    %c0_i32 = arith.constant 0 : i32
    %c0_i32_0 = arith.constant 0 : i32
    return %arg0, %c0_i32 : i32, i32
  }
  func.func @transform_1(%arg0: i32) -> (i32, i32) {
    %c0_i32 = arith.constant 0 : i32
    %c0_i32_0 = arith.constant 0 : i32
    %c0_i32_1 = arith.constant 0 : i32
    return %c0_i32, %c0_i32_0 : i32, i32
  }
  func.func @transform_2(%arg0: i32) -> (i32, i32) {
    %c0_i32 = arith.constant 0 : i32
    %c0_i32_0 = arith.constant 0 : i32
    %c0_i32_1 = arith.constant 0 : i32
    return %c0_i32, %c0_i32_0 : i32, i32
  }
  func.func @transform_3(%arg0: i32) -> (i32, i32) {
    %c0_i32 = arith.constant 0 : i32
    %c0_i32_0 = arith.constant 0 : i32
    %c0_i32_1 = arith.constant 0 : i32
    return %c0_i32, %c0_i32_0 : i32, i32
  }
  func.func @transform_4(%arg0: i32) -> (i32, i32) {
    %c0_i32 = arith.constant 0 : i32
    %c0_i32_0 = arith.constant 0 : i32
    %c0_i32_1 = arith.constant 0 : i32
    return %c0_i32, %c0_i32_0 : i32, i32
  }
  func.func @transform_5(%arg0: i32) -> (i32, i32) {
    %c0_i32 = arith.constant 0 : i32
    %c0_i32_0 = arith.constant 0 : i32
    return %arg0, %c0_i32 : i32, i32
  }
}

</mosaic_0001>

<llo_original>
// kernel: ffnn_forward.1
$region0: #{ffnn_forward.1}
  #allocation0 [shape = 'u32[]', space=smem, size = 0x4, offset = 0x4, fixed_abs, tag = 'smem constant byte address 0x4 - core index']
  #allocation1 [shape = 'u32[72,128]{1,0:T(1,128)}', space=vmem, size = 0x9000, scoped, tag = 'internal scratch']
  %s0 = inlined_call_operand.hbm [shape: f32[8,32], index: 0, kind: input, shape index: {}]
  %s1 = inlined_call_operand.hbm [shape: bf16[32,128], index: 1, kind: input, shape index: {}]
  %s2 = inlined_call_operand.vmem [shape: f32[1,128], index: 2, kind: input, shape index: {}]
  %s3 = inlined_call_operand.hbm [shape: bf16[128,128], index: 3, kind: input, shape index: {}]
  %s4 = inlined_call_operand.vmem [shape: f32[1,128], index: 4, kind: input, shape index: {}]
  %s5 = inlined_call_operand.hbm [shape: f32[8,5], index: 5, kind: output, shape index: {}]
  %s6 = sld [smem:[#allocation0]]
  $region42: #{ffnn_forward.1} parent=0
    _
  %s8 = ssub.s32 1, %s6
  %s9 = scalar_select 0, %s8, %s6
  $region1: #{ffnn_forward.1} parent=0
    #allocation2 [shape = 'u8[4096]{0}', space=vmem, size = 0x1000, scoped, tag = 'input window, operand 0, single buffered']
    #allocation3 [shape = 's32[1]{0}', space=sflag, size = 0x4, scoped, tag = 'scoped memory for ffnn_forward.1']
    #allocation4 [shape = 's32[1]{0}', space=sflag, size = 0x4, scoped, tag = 'scoped memory for ffnn_forward.1']
    #allocation5 [shape = 'u8[8192]{0}', space=vmem, size = 0x2000, scoped, tag = 'input window, operand 1, single buffered']
    #allocation6 [shape = 's32[1]{0}', space=sflag, size = 0x4, scoped, tag = 'scoped memory for ffnn_forward.1']
    #allocation7 [shape = 'u8[32768]{0}', space=vmem, size = 0x8000, scoped, tag = 'input window, operand 3, single buffered']
    #allocation8 [shape = 'u8[4096]{0}', space=vmem, size = 0x1000, scoped, tag = 'output window, operand 0, single buffered']
    %10 = vsyncpa [#allocation3], 0
    %11 = vsyncpa [#allocation6], 0
    %12 = vsyncpa [#allocation4], 0
    // Predicated region
    $region2: #{ffnn_forward.1} parent=1 // pred_check
      _
    $region3: #{ffnn_forward.1} parent=1 // pred_check_branch
      %14 = sbr.rel (0) target = $region5
    $region4: #{ffnn_forward.1} parent=1 // pred_region
      %16 = vsyncadd [#allocation3], 0
      %s18 = sshll.u32 %s0, 4
      %s19 = int_to_ptr.hbm [resolvable:$true] %s18
      %s20 = sshll.u32 [#allocation2], 4
      %s21 = int_to_ptr.vmem [resolvable:$true] %s20
      %23 = dma.hbm_to_vmem [thread:$0]  %s19, 128, %s21, [#allocation3]
    $region5: #{ffnn_forward.1} parent=1 // pred_fallthru
      _
    // Predicated region
    $region6: #{ffnn_forward.1} parent=1 // pred_check
      _
    $region7: #{ffnn_forward.1} parent=1 // pred_check_branch
      %25 = sbr.rel (0) target = $region9
    $region8: #{ffnn_forward.1} parent=1 // pred_region
      %27 = vsyncadd [#allocation6], 0
      %s28 = sshll.u32 %s1, 4
      %s29 = int_to_ptr.hbm [resolvable:$true] %s28
      %s30 = sshll.u32 [#allocation5], 4
      %s31 = int_to_ptr.vmem [resolvable:$true] %s30
      %36 = dma.hbm_to_vmem [thread:$0]  %s29, 256, %s31, [#allocation6], 64, 64, 4
    $region9: #{ffnn_forward.1} parent=1 // pred_fallthru
      _
    // Predicated region
    $region10: #{ffnn_forward.1} parent=1 // pred_check
      _
    $region11: #{ffnn_forward.1} parent=1 // pred_check_branch
      %38 = sbr.rel (0) target = $region13
    $region12: #{ffnn_forward.1} parent=1 // pred_region
      _
    $region13: #{ffnn_forward.1} parent=1 // pred_fallthru
      _
    // Predicated region
    $region14: #{ffnn_forward.1} parent=1 // pred_check
      _
    $region15: #{ffnn_forward.1} parent=1 // pred_check_branch
      %40 = sbr.rel (0) target = $region17
    $region16: #{ffnn_forward.1} parent=1 // pred_region
      %42 = vsyncadd [#allocation6], 0
      %s43 = sshll.u32 %s3, 4
      %s44 = int_to_ptr.hbm [resolvable:$true] %s43
      %s45 = sshll.u32 [#allocation7], 4
      %s46 = int_to_ptr.vmem [resolvable:$true] %s45
      %51 = dma.hbm_to_vmem [thread:$0]  %s44, 1024, %s46, [#allocation6], 64, 64, 4
    $region17: #{ffnn_forward.1} parent=1 // pred_fallthru
      _
    // Predicated region
    $region18: #{ffnn_forward.1} parent=1 // pred_check
      _
    $region19: #{ffnn_forward.1} parent=1 // pred_check_branch
      %53 = sbr.rel (0) target = $region21
    $region20: #{ffnn_forward.1} parent=1 // pred_region
      _
    $region21: #{ffnn_forward.1} parent=1 // pred_fallthru
      _
    // Predicated region
    $region22: #{ffnn_forward.1} parent=1 // pred_check
      _
    $region23: #{ffnn_forward.1} parent=1 // pred_check_branch
      %55 = sbr.rel (0) target = $region25
    $region24: #{ffnn_forward.1} parent=1 // pred_region
      %57 = dma.done [#allocation3], 128
    $region25: #{ffnn_forward.1} parent=1 // pred_fallthru
      _
    // Predicated region
    $region26: #{ffnn_forward.1} parent=1 // pred_check
      _
    $region27: #{ffnn_forward.1} parent=1 // pred_check_branch
      %59 = sbr.rel (0) target = $region29
    $region28: #{ffnn_forward.1} parent=1 // pred_region
      %61 = dma.done [#allocation6], 256
    $region29: #{ffnn_forward.1} parent=1 // pred_fallthru
      _
    // Predicated region
    $region30: #{ffnn_forward.1} parent=1 // pred_check
      _
    $region31: #{ffnn_forward.1} parent=1 // pred_check_branch
      %63 = sbr.rel (0) target = $region33
    $region32: #{ffnn_forward.1} parent=1 // pred_region
      %65 = dma.done [#allocation6], 1024
    $region33: #{ffnn_forward.1} parent=1 // pred_fallthru
      _
    %v67 = vld [vmem:[#allocation2] sm:$0xff]
    %v68 = vpack.c.bf16 %v67, %v67
    %v69 = vld [vmem:[#allocation5] sm:$0xf]
    %v70 = vld [vmem:[#allocation5 + $0x4] sm:$0xf]
    %v71 = vld [vmem:[#allocation5 + $0x8] sm:$0xf]
    %v72 = vld [vmem:[#allocation5 + $0xc] sm:$0xf]
    %v73 = vld [vmem:[%s2] sm:$0x1]
    %v75 = vperm.slane %v73, 0
    %v81 = vunpack.c.l.b16 %v69
    %v82 = vunpack.c.l.b16 %v70
    %v83 = vunpack.c.l.b16 %v71
    %v84 = vunpack.c.l.b16 %v72
    %v85 = vpack.c.b16 %v82, %v81
    %v86 = vpack.c.b16 %v84, %v83
    %vm89 = vcmask 261120
    %v91 = vsel %vm89, %v68, 0
    %93 = vmatpush.bf16.msra.mxu0 0
    %94 = vmatpush.bf16.msra.mxu0 0
    %95 = vmatpush.bf16.msra.mxu0 0
    %96 = vmatpush.bf16.msra.mxu0 0
    %97 = vmatpush.bf16.msra.mxu0 0
    %98 = vmatpush.bf16.msra.mxu0 0
    %99 = vmatpush.bf16.msra.mxu0 %v86
    %100 = vmatpush.bf16.msra.mxu0 %v85
    %101 = vmatmul.bf16.gmra.mxu0 %v91
    %v102 = vpop.f32.mrf.mxu0
    %v103 = vadd.f32 %v75, %v102
    %v104 = vpop.f32.mrf.mxu0
    %105 = vdwg.mxu0
    %v106 = vmax.f32 %v103, 0.0
    %v107 = vpack.c.bf16 %v106, %v106
    %v108 = vld [vmem:[#allocation7] sm:$0xf]
    %v109 = vld [vmem:[#allocation7 + $0x4] sm:$0xf]
    %v110 = vld [vmem:[#allocation7 + $0x8] sm:$0xf]
    %v111 = vld [vmem:[#allocation7 + $0xc] sm:$0xf]
    %v112 = vld [vmem:[#allocation7 + $0x10] sm:$0xf]
    %v113 = vld [vmem:[#allocation7 + $0x14] sm:$0xf]
    %v114 = vld [vmem:[#allocation7 + $0x18] sm:$0xf]
    %v115 = vld [vmem:[#allocation7 + $0x1c] sm:$0xf]
    %v116 = vld [vmem:[#allocation7 + $0x20] sm:$0xf]
    %v117 = vld [vmem:[#allocation7 + $0x24] sm:$0xf]
    %v118 = vld [vmem:[#allocation7 + $0x28] sm:$0xf]
    %v119 = vld [vmem:[#allocation7 + $0x2c] sm:$0xf]
    %v120 = vld [vmem:[#allocation7 + $0x30] sm:$0xf]
    %v121 = vld [vmem:[#allocation7 + $0x34] sm:$0xf]
    %v122 = vld [vmem:[#allocation7 + $0x38] sm:$0xf]
    %v123 = vld [vmem:[#allocation7 + $0x3c] sm:$0xf]
    %v124 = vld [vmem:[%s4] sm:$0x1]
    %v126 = vperm.slane %v124, 0
    %v144 = vunpack.c.l.b16 %v108
    %v145 = vunpack.c.l.b16 %v109
    %v146 = vunpack.c.l.b16 %v110
    %v147 = vunpack.c.l.b16 %v111
    %v148 = vunpack.c.l.b16 %v112
    %v149 = vunpack.c.l.b16 %v113
    %v150 = vunpack.c.l.b16 %v114
    %v151 = vunpack.c.l.b16 %v115
    %v152 = vunpack.c.l.b16 %v116
    %v153 = vunpack.c.l.b16 %v117
    %v154 = vunpack.c.l.b16 %v118
    %v155 = vunpack.c.l.b16 %v119
    %v156 = vunpack.c.l.b16 %v120
    %v157 = vunpack.c.l.b16 %v121
    %v158 = vunpack.c.l.b16 %v122
    %v159 = vunpack.c.l.b16 %v123
    %v160 = vpack.c.b16 %v145, %v144
    %v161 = vpack.c.b16 %v147, %v146
    %v162 = vpack.c.b16 %v149, %v148
    %v163 = vpack.c.b16 %v151, %v150
    %v164 = vpack.c.b16 %v153, %v152
    %v165 = vpack.c.b16 %v155, %v154
    %v166 = vpack.c.b16 %v157, %v156
    %v167 = vpack.c.b16 %v159, %v158
    %176 = vmatpush.bf16.msra.mxu0 %v167
    %177 = vmatpush.bf16.msra.mxu0 %v166
    %178 = vmatpush.bf16.msra.mxu0 %v165
    %179 = vmatpush.bf16.msra.mxu0 %v164
    %180 = vmatpush.bf16.msra.mxu0 %v163
    %181 = vmatpush.bf16.msra.mxu0 %v162
    %182 = vmatpush.bf16.msra.mxu0 %v161
    %183 = vmatpush.bf16.msra.mxu0 %v160
    %184 = vmatmul.bf16.gmra.mxu0 %v107
    %v185 = vpop.f32.mrf.mxu0
    %v186 = vadd.f32 %v126, %v185
    %v187 = vpop.f32.mrf.mxu0
    %188 = vdwg.mxu0
    %v189 = vlaneseq
    %v190 = vand.u32 %v189, 127
    %vm191 = vcmp.lt.s32.totalorder %v190, 5
    %v192 = vsel %vm191, 1, 0
    %vm193 = vcmp.eq.s32.totalorder %v192, 1
    %v194 = vsel %vm193, %v186, -inf
    %195 = vmax.xlane.f32.xlu0 %v194
    %v196 = vpop.xlane.xlu0 %195
    %v197 = vsub.f32 %v194, %v196
    %v198 = vmul.f32 %v197, 1.442695
    %v199 = vpow.pop %v198
    %200 = vadd.xlane.f32.xlu0 %v199
    %v201 = vpop.xlane.xlu0 %200
    %v202 = vlog2.pop %v201
    %v203 = vmul.f32 %v202, 0.6931472
    %v204 = vsub.f32 %v197, %v203
    %vm205 = vcmask 39936
    %206 = vst.msk [vmem:[#allocation8] sm:$0xff] %vm205, %v204
    // Predicated region
    $region34: #{ffnn_forward.1} parent=1 // pred_check
      _
    $region35: #{ffnn_forward.1} parent=1 // pred_check_branch
      %208 = sbr.rel (0) target = $region37
    $region36: #{ffnn_forward.1} parent=1 // pred_region
      %210 = vsyncadd [#allocation4], 0
      %s212 = sshll.u32 [#allocation8], 4
      %s213 = int_to_ptr.vmem [resolvable:$true] %s212
      %s214 = sshll.u32 %s5, 4
      %s215 = int_to_ptr.hbm [resolvable:$true] %s214
      %217 = dma.vmem_to_hbm [thread:$0]  %s213, 128, %s215, [#allocation4]
    $region37: #{ffnn_forward.1} parent=1 // pred_fallthru
      _
    // Predicated region
    $region38: #{ffnn_forward.1} parent=1 // pred_check
      _
    $region39: #{ffnn_forward.1} parent=1 // pred_check_branch
      %219 = sbr.rel (0) target = $region41
    $region40: #{ffnn_forward.1} parent=1 // pred_region
      %221 = dma.done [#allocation4], 128
    $region41: #{ffnn_forward.1} parent=1 // pred_fallthru
      _
    %222 = vsyncpa [#allocation3], 1
    %223 = vsyncpa [#allocation6], 1
    %224 = vsyncpa [#allocation4], 1

</llo_original>
